<compile_context>
chip_gen: v6e
topology: v6e:2x2x1
jax: 0.10.0
libtpu: 0.0.40
codegen_flags: <defaults>
</compile_context>

<pallas_src>
import functools

import jax
import jax.numpy as jnp
from jax import lax
from jax.experimental import pallas as pl
from jax.experimental.pallas import tpu as pltpu

HIDDEN = 100   # fixed by the module (fc1: emb_dim -> 100, fc2/fc3: 100 -> 1)
HPAD = 128     # lane-aligned padded hidden width (lane HIDDEN = constant 1.0 bias)

_MIB = 1 << 20


def _vecsim_kernel(fb, x_ref, w1_ref, b1_ref, w23_ref, before_ref, pred_ref):
    """One batch tile.

    x_ref:      (fb, T, emb_dim) bf16  -- fb-major, so the fb reduction is a plain
                                          VPU accumulation over the leading axis.
    w1_ref:     (emb_dim, 128)   bf16  -- fc1 weight, hidden padded 100 -> 128.
    b1_ref:     (1, 128)         f32   -- fc1 bias; lane HIDDEN == 1.0 bias feature.
    w23_ref:    (2, 128)         f32   -- fused fc2/fc3 weights; lane HIDDEN = b2/b3.
    before_ref: (T, 1)           f32
    pred_ref:   (T, 1)           f32
    """
    w1 = w1_ref[...]
    b1 = b1_ref[...]
    tile_bs = x_ref.shape[1]

    def step(x_j, acc):
        # fc1 (+ bias) + ReLU on the MXU (bf16 in, f32 accumulate), then fold into
        # the running per-example sum over the fb axis (pure VPU adds, no XLU).
        hj = jnp.dot(x_j, w1, preferred_element_type=jnp.float32)      # (T, 128)
        return acc + jnp.maximum(hj + b1, 0.0)

    if fb <= 16:
        hs = jnp.zeros((tile_bs, HPAD), jnp.float32)
        for j in range(fb):                       # static unroll: LLO scheduling visibility
            hs = step(x_ref[j], hs)
    else:
        hs = lax.fori_loop(0, fb, lambda j, acc: step(x_ref[j], acc),
                           jnp.zeros((tile_bs, HPAD), jnp.float32))
    # hs: (T, 128); lane HIDDEN now holds fb (one 1.0 per fb element).

    # Fused fc2/fc3 on the fb-reduced activations (exact f32; XLU lane reductions):
    #   sum_j (h_j . w2 + b2) == (sum_j h_j) . w2 + fb*b2   (bias via the 1.0 lane)
    sum_a = jnp.sum(hs * w23_ref[0:1, :], axis=-1, keepdims=True)      # (T, 1)
    sum_b = jnp.sum(hs * w23_ref[1:2, :], axis=-1, keepdims=True)      # (T, 1)

    # predict_loss = sum(a, dim=1) * before_loss + sum(b, dim=1)
    pred_ref[...] = sum_a * before_ref[...] + sum_b                    # (T, 1)


def _tile_vmem_bytes(tile_bs, fb, emb_dim):
    """Conservative VMEM estimate for one tile, including the 128-lane padding of
    the emb_dim axis and Pallas double-buffering of every pipelined operand."""
    dpad = max(128, -(-emb_dim // 128) * 128)          # lane padding of emb_dim
    x_block = fb * tile_bs * dpad * 2                  # bf16 x tile
    io_block = 2 * tile_bs * 128 * 4                   # before + pred tiles (f32, lane-padded)
    weights = (-(-emb_dim // 8) * 8) * 128 * 2 + 2 * 8 * 128 * 4   # w1 + b1 + w23 (padded)
    interm = 3 * tile_bs * 128 * 4                     # hj / hs f32 intermediates + slack
    return 2 * (x_block + io_block + weights) + interm + (1 << 16)


def _pick_tile_bs(bs, fb, emb_dim, *, vmem_budget_bytes=20 * _MIB, max_tile_rows=4096):
    """Largest legal batch tile under the VMEM budget; keeps >=2 grid steps when
    that does not shrink the tile below ~256 rows (v7x two-TensorCore sharding)."""
    def legal(t):
        return (t == bs) or (t % 8 == 0)               # (8,128) rule on the block's T dim
    cands = [t for t in range(1, bs + 1)
             if bs % t == 0 and legal(t) and t * fb <= max_tile_rows
             and _tile_vmem_bytes(t, fb, emb_dim) <= vmem_budget_bytes]
    if not cands:
        return bs        # full-batch fallback is always BlockSpec-legal (may need big VMEM)
    best = max(cands)
    split = [t for t in cands if bs // t >= 2]
    if split:
        best_split = max(split)
        if best_split * fb >= min(256, best * fb):
            return best_split
    return best


def vector_simulator_forward(params, orders, before_loss, after_loss,
                             test_sample_ids, train_example_nums,
                             hyper_parameter, is_train=True,
                             matmul_dtype=jnp.bfloat16, max_tile_rows=4096):
    emb_w = params["emb"]
    bs, fb = orders.shape
    emb_dim = emb_w.shape[1]

    # _adjust_orders: orders[i] = train_example_nums * test_sample_id[i] + orders[i]
    new_orders = train_example_nums * test_sample_ids[:, None] + orders          # (bs, fb)

    # nn.Embedding lookup (gather glue, kept in plain JAX).  The indices are emitted
    # fb-major so the gathered slab is already (fb, bs, D) — no extra HBM transpose.
    # bf16 activations halve the dominant HBM->VMEM stream into the kernel.
    # TODO(synk): fuse this gather into the kernel to kill the x HBM round trip.
    idx = new_orders.T.reshape(-1)                                               # (fb*bs,)
    x = (jnp.take(emb_w, idx, axis=0)
         .astype(matmul_dtype)
         .reshape(fb, bs, emb_dim))                                              # (fb, bs, D)

    # Pad hidden 100 -> 128; lane HIDDEN is a constant-1 bias feature.
    w1f = params["w1"].astype(jnp.float32)
    b1f = params["b1"].astype(jnp.float32)
    w1_p = (jnp.zeros((emb_dim, HPAD), jnp.float32)
            .at[:, :HIDDEN].set(w1f).astype(matmul_dtype))                       # (D, 128)
    b1_p = (jnp.zeros((1, HPAD), jnp.float32)
            .at[0, :HIDDEN].set(b1f).at[0, HIDDEN].set(1.0))                     # (1, 128)

    # Fuse fc2/fc3 into one (2, 128) weight; their biases live in lane HIDDEN.
    w23 = jnp.zeros((2, HPAD), jnp.float32)
    w23 = w23.at[0, :HIDDEN].set(params["w2"][:, 0].astype(jnp.float32))
    w23 = w23.at[0, HIDDEN].set(params["b2"].astype(jnp.float32))
    w23 = w23.at[1, :HIDDEN].set(params["w3"][:, 0].astype(jnp.float32))
    w23 = w23.at[1, HIDDEN].set(params["b3"].astype(jnp.float32))                # (2, 128)

    before2 = before_loss.reshape(bs, 1).astype(jnp.float32)

    tile_bs = _pick_tile_bs(bs, fb, emb_dim, max_tile_rows=max_tile_rows)
    nb = bs // tile_bs
    vmem_limit = int(max(32 * _MIB, _tile_vmem_bytes(tile_bs, fb, emb_dim) + 8 * _MIB))

    kernel = functools.partial(_vecsim_kernel, fb)
    const = lambda i: (0, 0)

    pred = pl.pallas_call(
        kernel,
        out_shape=jax.ShapeDtypeStruct((bs, 1), jnp.float32),
        grid=(nb,),
        in_specs=[
            pl.BlockSpec((fb, tile_bs, emb_dim), lambda i: (0, i, 0)),  # x tile (pipelined)
            pl.BlockSpec((emb_dim, HPAD), const),                       # w1 (resident)
            pl.BlockSpec((1, HPAD), const),                             # b1 (+ bias lane)
            pl.BlockSpec((2, HPAD), const),                             # fused w2/w3 (+ biases)
            pl.BlockSpec((tile_bs, 1), lambda i: (i, 0)),               # before_loss tile
        ],
        out_specs=pl.BlockSpec((tile_bs, 1), lambda i: (i, 0)),
        compiler_params=pltpu.CompilerParams(
            dimension_semantics=("parallel",),         # 2-TC sharding on v7x
            vmem_limit_bytes=vmem_limit),              # larger tiles than scoped defaults
    )(x, w1_p, b1_p, w23, before2)

    predict_loss = pred[:, 0]

    # Scalar epilogue reductions kept in plain JAX (tiny; avoids DMA-ing the full
    # embedding table into VMEM and keeps the grid axis parallel-safe).
    mse_loss = jnp.mean((after_loss.astype(jnp.float32) - predict_loss) ** 2)
    if is_train:
        e = emb_w.astype(jnp.float32)
        L2_loss = jnp.float32(hyper_parameter) * (
            jnp.sqrt(jnp.sum(e[:, 0] * e[:, 0])) +
            jnp.sqrt(jnp.sum(e[:, 1] * e[:, 1])))
    else:
        L2_loss = jnp.float32(0.0)

    return {
        "mse_loss": mse_loss,
        "L2_loss": L2_loss,
        "predict_loss": predict_loss,
        "tot_loss": mse_loss + L2_loss,
    }


def _reference(params, orders, before, after, ids, train_n, hyper,
               is_train=True, matmul_dtype=jnp.bfloat16):
    """Pure-JAX reference replicating the PyTorch forward, with the same bf16
    rounding of the fc1 matmul inputs the kernel applies (everything else f32)."""
    new_orders = train_n * ids[:, None] + orders
    x = params["emb"][new_orders].astype(matmul_dtype)                 # (bs, fb, D)
    w1 = params["w1"].astype(matmul_dtype)
    h = jnp.maximum(jnp.matmul(x, w1, preferred_element_type=jnp.float32)
                    + params["b1"].astype(jnp.float32), 0.0)           # (bs, fb, 100)
    a = jnp.sum(h * params["w2"][:, 0].astype(jnp.float32), axis=-1) + params["b2"]
    b = jnp.sum(h * params["w3"][:, 0].astype(jnp.float32), axis=-1) + params["b3"]
    pred = jnp.sum(a, axis=1) * before + jnp.sum(b, axis=1)            # (bs,)
    mse = jnp.mean((after - pred) ** 2)
    l2 = 0.0
    if is_train:
        l2 = hyper * (jnp.linalg.norm(params["emb"][:, 0]) +
                      jnp.linalg.norm(params["emb"][:, 1]))
    return pred, mse, l2, mse + l2


if __name__ == "__main__":
    # Small, forward-consistent shapes (picked so the kernel exercises a 2-block grid).
    train_example_nums = 8
    test_example_nums = 64
    emb_dim = 32
    bs = 64                    # batch of test samples
    fb = 8                     # finetune_gpt2_bsz
    hyper_parameter = 0.5
    n_emb = train_example_nums * test_example_nums

    key = jax.random.PRNGKey(0)
    k = jax.random.split(key, 10)

    params = {
        "emb": jax.random.normal(k[0], (n_emb, emb_dim), jnp.float32),
        "w1": jax.random.normal(k[1], (emb_dim, HIDDEN), jnp.float32) * 0.1,
        "b1": jax.random.normal(k[2], (HIDDEN,), jnp.float32) * 0.1,
        "w2": jax.random.normal(k[3], (HIDDEN, 1), jnp.float32) * 0.1,
        "b2": jax.random.normal(k[4], (), jnp.float32) * 0.1,
        "w3": jax.random.normal(k[5], (HIDDEN, 1), jnp.float32) * 0.1,
        "b3": jax.random.normal(k[6], (), jnp.float32) * 0.1,
    }

    orders = jax.random.randint(k[7], (bs, fb), 0, train_example_nums, dtype=jnp.int32)
    test_sample_ids = jax.random.randint(k[8], (bs,), 0, test_example_nums, dtype=jnp.int32)
    before_loss = jax.random.uniform(k[9], (bs,), jnp.float32, 0.5, 2.0)
    after_loss = before_loss * 0.9 + 0.05

    fwd = jax.jit(functools.partial(vector_simulator_forward,
                                    hyper_parameter=hyper_parameter, is_train=True))
    out = fwd(params, orders, before_loss, after_loss, test_sample_ids,
              train_example_nums)
    jax.block_until_ready(out)

    ref_pred, ref_mse, ref_l2, ref_tot = _reference(
        params, orders, before_loss, after_loss, test_sample_ids,
        train_example_nums, hyper_parameter, is_train=True)

    assert jnp.allclose(out["predict_loss"], ref_pred, rtol=1e-4, atol=1e-4), \
        (out["predict_loss"], ref_pred)
    assert jnp.allclose(out["mse_loss"], ref_mse, rtol=1e-4, atol=1e-4)
    assert jnp.allclose(out["L2_loss"], ref_l2, rtol=1e-4, atol=1e-4)
    assert jnp.allclose(out["tot_loss"], ref_tot, rtol=1e-4, atol=1e-4)

    print("KERNEL_OK")
</pallas_src>

<mosaic_0001>
module attributes {stable_mosaic.version = 11 : i64} {
  func.func @_vecsim_kernel(%arg0: i32, %arg1: memref<8x32x32xbf16, #tpu.memory_space<vmem>>, %arg2: memref<32x128xbf16, #tpu.memory_space<vmem>>, %arg3: memref<1x128xf32, #tpu.memory_space<vmem>>, %arg4: memref<2x128xf32, #tpu.memory_space<vmem>>, %arg5: memref<32x1xf32, #tpu.memory_space<vmem>>, %arg6: memref<32x1xf32, #tpu.memory_space<vmem>>) attributes {dimension_semantics = [#tpu.dimension_semantics<parallel>], iteration_bounds = array<i64: 2>, scalar_prefetch = 0 : i64, scratch_operands = 0 : i64, tpu.core_type = #tpu.core_type<tc>, window_params = [{transform_indices = @transform_0, window_bounds = array<i64: 8, 32, 32>}, {pipeline_mode = #tpu.pipeline_mode<synchronous>, transform_indices = @transform_1, window_bounds = array<i64: 32, 128>}, {pipeline_mode = #tpu.pipeline_mode<synchronous>, transform_indices = @transform_2, window_bounds = array<i64: 1, 128>}, {pipeline_mode = #tpu.pipeline_mode<synchronous>, transform_indices = @transform_3, window_bounds = array<i64: 2, 128>}, {transform_indices = @transform_4, window_bounds = array<i64: 32, 1>}, {transform_indices = @transform_5, window_bounds = array<i64: 32, 1>}]} {
    %c0 = arith.constant 0 : index
    %c0_0 = arith.constant 0 : index
    %0 = vector.load %arg2[%c0, %c0_0] : memref<32x128xbf16, #tpu.memory_space<vmem>>, vector<32x128xbf16>
    %c0_1 = arith.constant 0 : index
    %c0_2 = arith.constant 0 : index
    %1 = vector.load %arg3[%c0_1, %c0_2] : memref<1x128xf32, #tpu.memory_space<vmem>>, vector<1x128xf32>
    %cst = arith.constant 0.000000e+00 : f32
    %2 = vector.broadcast %cst : f32 to vector<32x128xf32>
    %c0_3 = arith.constant 0 : index
    %c0_4 = arith.constant 0 : index
    %c0_5 = arith.constant 0 : index
    %3 = vector.load %arg1[%c0_3, %c0_4, %c0_5] : memref<8x32x32xbf16, #tpu.memory_space<vmem>>, vector<1x32x32xbf16>
    %4 = vector.shape_cast %3 : vector<1x32x32xbf16> to vector<32x32xbf16>
    %cst_6 = arith.constant dense<0.000000e+00> : vector<32x128xf32>
    %5 = tpu.matmul %4, %0, %cst_6 {dimension_numbers = #tpu.dot_dimension_numbers<[1], [0], [0], [1], [0, 0, 1, 1], [], []>} : vector<32x32xbf16>, vector<32x128xbf16>, vector<32x128xf32> -> vector<32x128xf32>
    %6 = vector.broadcast %1 : vector<1x128xf32> to vector<32x128xf32>
    %7 = arith.addf %5, %6 : vector<32x128xf32>
    %cst_7 = arith.constant 0.000000e+00 : f32
    %8 = vector.broadcast %cst_7 : f32 to vector<32x128xf32>
    %9 = arith.maximumf %7, %8 : vector<32x128xf32>
    %10 = arith.addf %2, %9 : vector<32x128xf32>
    %c1 = arith.constant 1 : index
    %c0_8 = arith.constant 0 : index
    %c0_9 = arith.constant 0 : index
    %11 = vector.load %arg1[%c1, %c0_8, %c0_9] : memref<8x32x32xbf16, #tpu.memory_space<vmem>>, vector<1x32x32xbf16>
    %12 = vector.shape_cast %11 : vector<1x32x32xbf16> to vector<32x32xbf16>
    %cst_10 = arith.constant dense<0.000000e+00> : vector<32x128xf32>
    %13 = tpu.matmul %12, %0, %cst_10 {dimension_numbers = #tpu.dot_dimension_numbers<[1], [0], [0], [1], [0, 0, 1, 1], [], []>} : vector<32x32xbf16>, vector<32x128xbf16>, vector<32x128xf32> -> vector<32x128xf32>
    %14 = vector.broadcast %1 : vector<1x128xf32> to vector<32x128xf32>
    %15 = arith.addf %13, %14 : vector<32x128xf32>
    %cst_11 = arith.constant 0.000000e+00 : f32
    %16 = vector.broadcast %cst_11 : f32 to vector<32x128xf32>
    %17 = arith.maximumf %15, %16 : vector<32x128xf32>
    %18 = arith.addf %10, %17 : vector<32x128xf32>
    %c2 = arith.constant 2 : index
    %c0_12 = arith.constant 0 : index
    %c0_13 = arith.constant 0 : index
    %19 = vector.load %arg1[%c2, %c0_12, %c0_13] : memref<8x32x32xbf16, #tpu.memory_space<vmem>>, vector<1x32x32xbf16>
    %20 = vector.shape_cast %19 : vector<1x32x32xbf16> to vector<32x32xbf16>
    %cst_14 = arith.constant dense<0.000000e+00> : vector<32x128xf32>
    %21 = tpu.matmul %20, %0, %cst_14 {dimension_numbers = #tpu.dot_dimension_numbers<[1], [0], [0], [1], [0, 0, 1, 1], [], []>} : vector<32x32xbf16>, vector<32x128xbf16>, vector<32x128xf32> -> vector<32x128xf32>
    %22 = vector.broadcast %1 : vector<1x128xf32> to vector<32x128xf32>
    %23 = arith.addf %21, %22 : vector<32x128xf32>
    %cst_15 = arith.constant 0.000000e+00 : f32
    %24 = vector.broadcast %cst_15 : f32 to vector<32x128xf32>
    %25 = arith.maximumf %23, %24 : vector<32x128xf32>
    %26 = arith.addf %18, %25 : vector<32x128xf32>
    %c3 = arith.constant 3 : index
    %c0_16 = arith.constant 0 : index
    %c0_17 = arith.constant 0 : index
    %27 = vector.load %arg1[%c3, %c0_16, %c0_17] : memref<8x32x32xbf16, #tpu.memory_space<vmem>>, vector<1x32x32xbf16>
    %28 = vector.shape_cast %27 : vector<1x32x32xbf16> to vector<32x32xbf16>
    %cst_18 = arith.constant dense<0.000000e+00> : vector<32x128xf32>
    %29 = tpu.matmul %28, %0, %cst_18 {dimension_numbers = #tpu.dot_dimension_numbers<[1], [0], [0], [1], [0, 0, 1, 1], [], []>} : vector<32x32xbf16>, vector<32x128xbf16>, vector<32x128xf32> -> vector<32x128xf32>
    %30 = vector.broadcast %1 : vector<1x128xf32> to vector<32x128xf32>
    %31 = arith.addf %29, %30 : vector<32x128xf32>
    %cst_19 = arith.constant 0.000000e+00 : f32
    %32 = vector.broadcast %cst_19 : f32 to vector<32x128xf32>
    %33 = arith.maximumf %31, %32 : vector<32x128xf32>
    %34 = arith.addf %26, %33 : vector<32x128xf32>
    %c4 = arith.constant 4 : index
    %c0_20 = arith.constant 0 : index
    %c0_21 = arith.constant 0 : index
    %35 = vector.load %arg1[%c4, %c0_20, %c0_21] : memref<8x32x32xbf16, #tpu.memory_space<vmem>>, vector<1x32x32xbf16>
    %36 = vector.shape_cast %35 : vector<1x32x32xbf16> to vector<32x32xbf16>
    %cst_22 = arith.constant dense<0.000000e+00> : vector<32x128xf32>
    %37 = tpu.matmul %36, %0, %cst_22 {dimension_numbers = #tpu.dot_dimension_numbers<[1], [0], [0], [1], [0, 0, 1, 1], [], []>} : vector<32x32xbf16>, vector<32x128xbf16>, vector<32x128xf32> -> vector<32x128xf32>
    %38 = vector.broadcast %1 : vector<1x128xf32> to vector<32x128xf32>
    %39 = arith.addf %37, %38 : vector<32x128xf32>
    %cst_23 = arith.constant 0.000000e+00 : f32
    %40 = vector.broadcast %cst_23 : f32 to vector<32x128xf32>
    %41 = arith.maximumf %39, %40 : vector<32x128xf32>
    %42 = arith.addf %34, %41 : vector<32x128xf32>
    %c5 = arith.constant 5 : index
    %c0_24 = arith.constant 0 : index
    %c0_25 = arith.constant 0 : index
    %43 = vector.load %arg1[%c5, %c0_24, %c0_25] : memref<8x32x32xbf16, #tpu.memory_space<vmem>>, vector<1x32x32xbf16>
    %44 = vector.shape_cast %43 : vector<1x32x32xbf16> to vector<32x32xbf16>
    %cst_26 = arith.constant dense<0.000000e+00> : vector<32x128xf32>
    %45 = tpu.matmul %44, %0, %cst_26 {dimension_numbers = #tpu.dot_dimension_numbers<[1], [0], [0], [1], [0, 0, 1, 1], [], []>} : vector<32x32xbf16>, vector<32x128xbf16>, vector<32x128xf32> -> vector<32x128xf32>
    %46 = vector.broadcast %1 : vector<1x128xf32> to vector<32x128xf32>
    %47 = arith.addf %45, %46 : vector<32x128xf32>
    %cst_27 = arith.constant 0.000000e+00 : f32
    %48 = vector.broadcast %cst_27 : f32 to vector<32x128xf32>
    %49 = arith.maximumf %47, %48 : vector<32x128xf32>
    %50 = arith.addf %42, %49 : vector<32x128xf32>
    %c6 = arith.constant 6 : index
    %c0_28 = arith.constant 0 : index
    %c0_29 = arith.constant 0 : index
    %51 = vector.load %arg1[%c6, %c0_28, %c0_29] : memref<8x32x32xbf16, #tpu.memory_space<vmem>>, vector<1x32x32xbf16>
    %52 = vector.shape_cast %51 : vector<1x32x32xbf16> to vector<32x32xbf16>
    %cst_30 = arith.constant dense<0.000000e+00> : vector<32x128xf32>
    %53 = tpu.matmul %52, %0, %cst_30 {dimension_numbers = #tpu.dot_dimension_numbers<[1], [0], [0], [1], [0, 0, 1, 1], [], []>} : vector<32x32xbf16>, vector<32x128xbf16>, vector<32x128xf32> -> vector<32x128xf32>
    %54 = vector.broadcast %1 : vector<1x128xf32> to vector<32x128xf32>
    %55 = arith.addf %53, %54 : vector<32x128xf32>
    %cst_31 = arith.constant 0.000000e+00 : f32
    %56 = vector.broadcast %cst_31 : f32 to vector<32x128xf32>
    %57 = arith.maximumf %55, %56 : vector<32x128xf32>
    %58 = arith.addf %50, %57 : vector<32x128xf32>
    %c7 = arith.constant 7 : index
    %c0_32 = arith.constant 0 : index
    %c0_33 = arith.constant 0 : index
    %59 = vector.load %arg1[%c7, %c0_32, %c0_33] : memref<8x32x32xbf16, #tpu.memory_space<vmem>>, vector<1x32x32xbf16>
    %60 = vector.shape_cast %59 : vector<1x32x32xbf16> to vector<32x32xbf16>
    %cst_34 = arith.constant dense<0.000000e+00> : vector<32x128xf32>
    %61 = tpu.matmul %60, %0, %cst_34 {dimension_numbers = #tpu.dot_dimension_numbers<[1], [0], [0], [1], [0, 0, 1, 1], [], []>} : vector<32x32xbf16>, vector<32x128xbf16>, vector<32x128xf32> -> vector<32x128xf32>
    %62 = vector.broadcast %1 : vector<1x128xf32> to vector<32x128xf32>
    %63 = arith.addf %61, %62 : vector<32x128xf32>
    %cst_35 = arith.constant 0.000000e+00 : f32
    %64 = vector.broadcast %cst_35 : f32 to vector<32x128xf32>
    %65 = arith.maximumf %63, %64 : vector<32x128xf32>
    %66 = arith.addf %58, %65 : vector<32x128xf32>
    %c0_36 = arith.constant 0 : index
    %c0_37 = arith.constant 0 : index
    %67 = vector.load %arg4[%c0_36, %c0_37] : memref<2x128xf32, #tpu.memory_space<vmem>>, vector<1x128xf32>
    %68 = vector.broadcast %67 : vector<1x128xf32> to vector<32x128xf32>
    %69 = arith.mulf %66, %68 : vector<32x128xf32>
    %cst_38 = arith.constant dense<0.000000e+00> : vector<32xf32>
    %70 = vector.multi_reduction <add>, %69, %cst_38 [1] : vector<32x128xf32> to vector<32xf32>
    %71 = vector.shape_cast %70 : vector<32xf32> to vector<32x1xf32>
    %c1_39 = arith.constant 1 : index
    %c0_40 = arith.constant 0 : index
    %72 = vector.load %arg4[%c1_39, %c0_40] : memref<2x128xf32, #tpu.memory_space<vmem>>, vector<1x128xf32>
    %73 = vector.broadcast %72 : vector<1x128xf32> to vector<32x128xf32>
    %74 = arith.mulf %66, %73 : vector<32x128xf32>
    %cst_41 = arith.constant dense<0.000000e+00> : vector<32xf32>
    %75 = vector.multi_reduction <add>, %74, %cst_41 [1] : vector<32x128xf32> to vector<32xf32>
    %76 = vector.shape_cast %75 : vector<32xf32> to vector<32x1xf32>
    %c0_42 = arith.constant 0 : index
    %c0_43 = arith.constant 0 : index
    %77 = vector.load %arg5[%c0_42, %c0_43] : memref<32x1xf32, #tpu.memory_space<vmem>>, vector<32x1xf32>
    %78 = arith.mulf %71, %77 : vector<32x1xf32>
    %79 = arith.addf %78, %76 : vector<32x1xf32>
    %c0_44 = arith.constant 0 : index
    %c0_45 = arith.constant 0 : index
    %80 = vector.load %arg6[%c0_44, %c0_45] : memref<32x1xf32, #tpu.memory_space<vmem>>, vector<32x1xf32>
    tpu.vector_store %arg6[%c0_44, %c0_45], %79 {strides = array<i32>} : memref<32x1xf32, #tpu.memory_space<vmem>>, vector<32x1xf32>,
    return
  }
  func.func @transform_0(%arg0: i32) -> (i32, i32, i32) {
    %c0_i32 = arith.constant 0 : i32
    %c0_i32_0 = arith.constant 0 : i32
    %c0_i32_1 = arith.constant 0 : i32
    return %c0_i32, %arg0, %c0_i32_0 : i32, i32, i32
  }
  func.func @transform_1(%arg0: i32) -> (i32, i32) {
    %c0_i32 = arith.constant 0 : i32
    %c0_i32_0 = arith.constant 0 : i32
    %c0_i32_1 = arith.constant 0 : i32
    return %c0_i32, %c0_i32_0 : i32, i32
  }
  func.func @transform_2(%arg0: i32) -> (i32, i32) {
    %c0_i32 = arith.constant 0 : i32
    %c0_i32_0 = arith.constant 0 : i32
    %c0_i32_1 = arith.constant 0 : i32
    return %c0_i32, %c0_i32_0 : i32, i32
  }
  func.func @transform_3(%arg0: i32) -> (i32, i32) {
    %c0_i32 = arith.constant 0 : i32
    %c0_i32_0 = arith.constant 0 : i32
    %c0_i32_1 = arith.constant 0 : i32
    return %c0_i32, %c0_i32_0 : i32, i32
  }
  func.func @transform_4(%arg0: i32) -> (i32, i32) {
    %c0_i32 = arith.constant 0 : i32
    %c0_i32_0 = arith.constant 0 : i32
    return %arg0, %c0_i32 : i32, i32
  }
  func.func @transform_5(%arg0: i32) -> (i32, i32) {
    %c0_i32 = arith.constant 0 : i32
    %c0_i32_0 = arith.constant 0 : i32
    return %arg0, %c0_i32 : i32, i32
  }
}

</mosaic_0001>

<llo_original>
// kernel: vector_simulator_forward.1
$region0: #{vector_simulator_forward.1}
  #allocation0 [shape = 'u32[]', space=smem, size = 0x4, offset = 0x4, fixed_abs, tag = 'smem constant byte address 0x4 - core index']
  #allocation1 [shape = 'u32[144,128]{1,0:T(1,128)}', space=vmem, size = 0x12000, scoped, tag = 'internal scratch']
  %s0 = inlined_call_operand.vmem [shape: bf16[8,64,32], index: 0, kind: input, shape index: {}]
  %s1 = inlined_call_operand.vmem [shape: bf16[32,128], index: 1, kind: input, shape index: {}]
  %s2 = inlined_call_operand.vmem [shape: f32[1,128], index: 2, kind: input, shape index: {}]
  %s3 = inlined_call_operand.vmem [shape: f32[2,128], index: 3, kind: input, shape index: {}]
  %s4 = inlined_call_operand.vmem [shape: f32[64,1], index: 4, kind: input, shape index: {}]
  %s5 = inlined_call_operand.vmem [shape: f32[64,1], index: 5, kind: output, shape index: {}]
  %s6 = sld [smem:[#allocation0]]
  $region94: #{vector_simulator_forward.1} parent=0
    _
  %s8 = ssub.s32 1, %s6
  %s9 = scalar_select 0, %s8, %s6
  $region1: #{vector_simulator_forward.1} parent=0
    #allocation2 [shape = 'u8[131072]{0}', space=vmem, size = 0x20000, scoped, tag = 'input window, operand 0']
    loop: start=0, step=1, limit=4
    $region2: #{vector_simulator_forward.1} parent=1 // loop_pre_header
      _
    $region3: #{vector_simulator_forward.1} parent=1 // loop_header
      %s11 = sphi 0, %s15
      %p12 = scmp.ge.s32.totalorder %s11, 4
      %s21 = sphi 0, %s23
      %s24 = sphi 0, %s21
      %s25 = sphi 0, %s24
      %s41 = sphi 0, %s25
      %s45 = sphi 0, %s45
      %s47 = sphi 0, %s45
      %s48 = sphi 0, %s47
      %s62 = sphi 0, %s48
      %s66 = sphi 0, %s66
      %s68 = sphi 0, %s66
      %s69 = sphi 0, %s68
      %s83 = sphi 0, %s69
      %s87 = sphi 0, %s87
      %s89 = sphi 0, %s87
      %s90 = sphi 0, %s89
      %s104 = sphi 0, %s90
      %s110 = sphi 0, %s112
      %s113 = sphi 0, %s110
      %s114 = sphi 0, %s113
      %s130 = sphi 0, %s114
      %s136 = sphi 0, %s138
      %s139 = sphi 0, %s136
      %s140 = sphi 0, %s139
      %s156 = sphi 0, %s140
    $region4: #{vector_simulator_forward.1} parent=1 // loop_header_branch
      %14 = sbr.rel (%p12) target = $region8
    $region5: #{vector_simulator_forward.1} parent=1 // loop_body
      %s16 = ssub.s32 %s11, 1
      %s17 = ssub.s32 %s11, 2
      %s18 = sadd.s32 %s11, 1
      %s19 = ssub.s32 %s11, %s18
      %p20 = scmp.eq.s32.totalorder %s19, 0
      %s22 = sadd.s32 %s21, 1
      %s23 = scalar_select %p20, %s21, %s22
      %p26 = pneg %p20
      %p27 = scmp.eq.s32.totalorder %s11, 1
      %p28 = por %p26, %p27
      %p29 = scmp.ne.s32.totalorder %s21, %s24
      %p30 = scmp.eq.s32.totalorder %s11, 0
      %p31 = por %p29, %p30
      %p32 = scmp.ne.s32.totalorder %s21, %s24
      %p33 = scmp.eq.s32.totalorder %s16, 1
      %p34 = por %p32, %p33
      %p35 = scmp.ne.s32.totalorder %s24, %s25
      %p36 = scmp.eq.s32.totalorder %s16, 0
      %p37 = por %p35, %p36
      %p38 = scmp.ne.s32.totalorder %s24, %s25
      %p39 = scmp.eq.s32.totalorder %s17, 1
      %p40 = por %p38, %p39
      %p42 = scmp.ne.s32.totalorder %s25, %s41
      %p43 = scmp.eq.s32.totalorder %s17, 0
      %p44 = por %p42, %p43
      %s46 = sadd.s32 %s45, 1
      %p49 = scmp.eq.s32.totalorder %s11, 1
      %p50 = scmp.ne.s32.totalorder %s45, %s47
      %p51 = scmp.eq.s32.totalorder %s11, 0
      %p52 = por %p50, %p51
      %p53 = scmp.ne.s32.totalorder %s45, %s47
      %p54 = scmp.eq.s32.totalorder %s16, 1
      %p55 = por %p53, %p54
      %p56 = scmp.ne.s32.totalorder %s47, %s48
      %p57 = scmp.eq.s32.totalorder %s16, 0
      %p58 = por %p56, %p57
      %p59 = scmp.ne.s32.totalorder %s47, %s48
      %p60 = scmp.eq.s32.totalorder %s17, 1
      %p61 = por %p59, %p60
      %p63 = scmp.ne.s32.totalorder %s48, %s62
      %p64 = scmp.eq.s32.totalorder %s17, 0
      %p65 = por %p63, %p64
      %s67 = sadd.s32 %s66, 1
      %p70 = scmp.eq.s32.totalorder %s11, 1
      %p71 = scmp.ne.s32.totalorder %s66, %s68
      %p72 = scmp.eq.s32.totalorder %s11, 0
      %p73 = por %p71, %p72
      %p74 = scmp.ne.s32.totalorder %s66, %s68
      %p75 = scmp.eq.s32.totalorder %s16, 1
      %p76 = por %p74, %p75
      %p77 = scmp.ne.s32.totalorder %s68, %s69
      %p78 = scmp.eq.s32.totalorder %s16, 0
      %p79 = por %p77, %p78
      %p80 = scmp.ne.s32.totalorder %s68, %s69
      %p81 = scmp.eq.s32.totalorder %s17, 1
      %p82 = por %p80, %p81
      %p84 = scmp.ne.s32.totalorder %s69, %s83
      %p85 = scmp.eq.s32.totalorder %s17, 0
      %p86 = por %p84, %p85
      %s88 = sadd.s32 %s87, 1
      %p91 = scmp.eq.s32.totalorder %s11, 1
      %p92 = scmp.ne.s32.totalorder %s87, %s89
      %p93 = scmp.eq.s32.totalorder %s11, 0
      %p94 = por %p92, %p93
      %p95 = scmp.ne.s32.totalorder %s87, %s89
      %p96 = scmp.eq.s32.totalorder %s16, 1
      %p97 = por %p95, %p96
      %p98 = scmp.ne.s32.totalorder %s89, %s90
      %p99 = scmp.eq.s32.totalorder %s16, 0
      %p100 = por %p98, %p99
      %p101 = scmp.ne.s32.totalorder %s89, %s90
      %p102 = scmp.eq.s32.totalorder %s17, 1
      %p103 = por %p101, %p102
      %p105 = scmp.ne.s32.totalorder %s90, %s104
      %p106 = scmp.eq.s32.totalorder %s17, 0
      %p107 = por %p105, %p106
      %s108 = ssub.s32 %s11, %s18
      %p109 = scmp.eq.s32.totalorder %s108, 0
      %s111 = sadd.s32 %s110, 1
      %s112 = scalar_select %p109, %s110, %s111
      %p115 = pneg %p109
      %p116 = scmp.eq.s32.totalorder %s11, 1
      %p117 = por %p115, %p116
      %p118 = scmp.ne.s32.totalorder %s110, %s113
      %p119 = scmp.eq.s32.totalorder %s11, 0
      %p120 = por %p118, %p119
      %p121 = scmp.ne.s32.totalorder %s110, %s113
      %p122 = scmp.eq.s32.totalorder %s16, 1
      %p123 = por %p121, %p122
      %p124 = scmp.ne.s32.totalorder %s113, %s114
      %p125 = scmp.eq.s32.totalorder %s16, 0
      %p126 = por %p124, %p125
      %p127 = scmp.ne.s32.totalorder %s113, %s114
      %p128 = scmp.eq.s32.totalorder %s17, 1
      %p129 = por %p127, %p128
      %p131 = scmp.ne.s32.totalorder %s114, %s130
      %p132 = scmp.eq.s32.totalorder %s17, 0
      %p133 = por %p131, %p132
      %s134 = ssub.s32 %s11, %s18
      %p135 = scmp.eq.s32.totalorder %s134, 0
      %s137 = sadd.s32 %s136, 1
      %s138 = scalar_select %p135, %s136, %s137
      %p141 = pneg %p135
      %p142 = scmp.eq.s32.totalorder %s11, 1
      %p143 = por %p141, %p142
      %p144 = scmp.ne.s32.totalorder %s136, %s139
      %p145 = scmp.eq.s32.totalorder %s11, 0
      %p146 = por %p144, %p145
      %p147 = scmp.ne.s32.totalorder %s136, %s139
      %p148 = scmp.eq.s32.totalorder %s16, 1
      %p149 = por %p147, %p148
      %p150 = scmp.ne.s32.totalorder %s139, %s140
      %p151 = scmp.eq.s32.totalorder %s16, 0
      %p152 = por %p150, %p151
      %p153 = scmp.ne.s32.totalorder %s139, %s140
      %p154 = scmp.eq.s32.totalorder %s17, 1
      %p155 = por %p153, %p154
      %p157 = scmp.ne.s32.totalorder %s140, %s156
      %p158 = scmp.eq.s32.totalorder %s17, 0
      %p159 = por %p157, %p158
      %p160 = scmp.le.s32.totalorder 1, %s11
      %p161 = scmp.lt.s32.totalorder %s11, 3
      %p162 = pnand %p160, %p161
      %p163 = pneg %p162
      // Predicated region
      $region9: #{vector_simulator_forward.1} parent=5 // pred_check
        _
      $region10: #{vector_simulator_forward.1} parent=5 // pred_check_branch
        %165 = sbr.rel (%p162) target = $region12
      $region11: #{vector_simulator_forward.1} parent=5 // pred_region
        %s166 = ssub.s32 %s11, 1
        // Predicated region
        $region13: #{vector_simulator_forward.1} parent=11 // pred_check
          %p167 = pneg %p58
        $region14: #{vector_simulator_forward.1} parent=11 // pred_check_branch
          %169 = sbr.rel (%p167) target = $region16
        $region15: #{vector_simulator_forward.1} parent=11 // pred_region
          _
        $region16: #{vector_simulator_forward.1} parent=11 // pred_fallthru
          _
        // Predicated region
        $region17: #{vector_simulator_forward.1} parent=11 // pred_check
          %p170 = pneg %p79
        $region18: #{vector_simulator_forward.1} parent=11 // pred_check_branch
          %172 = sbr.rel (%p170) target = $region20
        $region19: #{vector_simulator_forward.1} parent=11 // pred_region
          _
        $region20: #{vector_simulator_forward.1} parent=11 // pred_fallthru
          _
        // Predicated region
        $region21: #{vector_simulator_forward.1} parent=11 // pred_check
          %p173 = pneg %p100
        $region22: #{vector_simulator_forward.1} parent=11 // pred_check_branch
          %175 = sbr.rel (%p173) target = $region24
        $region23: #{vector_simulator_forward.1} parent=11 // pred_region
          _
        $region24: #{vector_simulator_forward.1} parent=11 // pred_fallthru
          _
      $region12: #{vector_simulator_forward.1} parent=5 // pred_fallthru
        _
      %p176 = scmp.lt.s32.totalorder %s11, 2
      // Predicated region
      $region25: #{vector_simulator_forward.1} parent=5 // pred_check
        %p177 = pneg %p176
      $region26: #{vector_simulator_forward.1} parent=5 // pred_check_branch
        %179 = sbr.rel (%p177) target = $region28
      $region27: #{vector_simulator_forward.1} parent=5 // pred_region
        // Predicated region
        $region29: #{vector_simulator_forward.1} parent=27 // pred_check
          %p180 = pneg %p31
        $region30: #{vector_simulator_forward.1} parent=27 // pred_check_branch
          %182 = sbr.rel (%p180) target = $region32
        $region31: #{vector_simulator_forward.1} parent=27 // pred_region
          %s183 = sand.u32 %s21, 1
          %s184 = sand.u32 %s21, 1
          %s185 = smul.addr %s184, 128
          %s186 = scalar_lea.vmem [#allocation2], %s185
          %s187 = smul.u32 4, %s11
          %s188 = smul.addr %s187, 4
          %s189 = scalar_lea.vmem %s0, %s188
          // Predicated region
          $region33: #{vector_simulator_forward.1} parent=31 // pred_check
            _
          $region34: #{vector_simulator_forward.1} parent=31 // pred_check_branch
            %191 = sbr.rel (0) target = $region36
          $region35: #{vector_simulator_forward.1} parent=31 // pred_region
            // Predicated region
            $region37: #{vector_simulator_forward.1} parent=35 // pred_check
              _
            $region38: #{vector_simulator_forward.1} parent=35 // pred_check_branch
              %193 = sbr.rel target = $region40
            $region39: #{vector_simulator_forward.1} parent=35 // pred_region
              // Predicated region
              $region52: #{vector_simulator_forward.1} parent=39 // pred_check
                _
              $region53: #{vector_simulator_forward.1} parent=39 // pred_check_branch
                %271 = sbr.rel (0) target = $region55
              $region54: #{vector_simulator_forward.1} parent=39 // pred_region
                loop: start=0, step=1, limit=1
                $region56: #{vector_simulator_forward.1} parent=54 // loop_pre_header
                  _
                $region57: #{vector_simulator_forward.1} parent=54 // loop_header
                  %s273 = sphi 0, %s277
                  %p274 = scmp.ge.s32.totalorder %s273, 1
                  %s278 = sphi %s189, %s189
                  %s279 = sphi %s186, %s186
                $region58: #{vector_simulator_forward.1} parent=54 // loop_header_branch
                  %276 = sbr.rel (%p274) target = $region62
                $region59: #{vector_simulator_forward.1} parent=54 // loop_body
                  _
                $region60: #{vector_simulator_forward.1} parent=54 // loop_footer
                  %s277 = sadd.s32 1, %s273
                $region61: #{vector_simulator_forward.1} parent=54 // loop_footer_branch
                  %272 = sbr.rel target = $region57
                $region62: #{vector_simulator_forward.1} parent=54 // loop_exit
                  _
                %s281 = ssub.s32 16, 1
                loop: start=0, step=1, limit=1
                $region63: #{vector_simulator_forward.1} parent=54 // loop_pre_header
                  _
                $region64: #{vector_simulator_forward.1} parent=54 // loop_header
                  %s283 = sphi 0, %s287
                  %p284 = scmp.ge.s32.totalorder %s283, 1
                  %s288 = sphi %s189, %s189
                  %s289 = sphi %s186, %s186
                $region65: #{vector_simulator_forward.1} parent=54 // loop_header_branch
                  %286 = sbr.rel (%p284) target = $region69
                $region66: #{vector_simulator_forward.1} parent=54 // loop_body
                  %v290 = vld [vmem:[%s288] sm:%s281]
                  %291 = vst [vmem:[%s289] sm:%s281] %v290
                  %v292 = vld [vmem:[%s288 + $0x4] sm:%s281]
                  %293 = vst [vmem:[%s289 + $0x4] sm:%s281] %v292
                  %v294 = vld [vmem:[%s288 + $0x8] sm:%s281]
                  %295 = vst [vmem:[%s289 + $0x8] sm:%s281] %v294
                  %v296 = vld [vmem:[%s288 + $0xc] sm:%s281]
                  %297 = vst [vmem:[%s289 + $0xc] sm:%s281] %v296
                  %v298 = vld [vmem:[%s288 + $0x20] sm:%s281]
                  %299 = vst [vmem:[%s289 + $0x10] sm:%s281] %v298
                  %v300 = vld [vmem:[%s288 + $0x24] sm:%s281]
                  %301 = vst [vmem:[%s289 + $0x14] sm:%s281] %v300
                  %v302 = vld [vmem:[%s288 + $0x28] sm:%s281]
                  %303 = vst [vmem:[%s289 + $0x18] sm:%s281] %v302
                  %v304 = vld [vmem:[%s288 + $0x2c] sm:%s281]
                  %305 = vst [vmem:[%s289 + $0x1c] sm:%s281] %v304
                  %v306 = vld [vmem:[%s288 + $0x40] sm:%s281]
                  %307 = vst [vmem:[%s289 + $0x20] sm:%s281] %v306
                  %v308 = vld [vmem:[%s288 + $0x44] sm:%s281]
                  %309 = vst [vmem:[%s289 + $0x24] sm:%s281] %v308
                  %v310 = vld [vmem:[%s288 + $0x48] sm:%s281]
                  %311 = vst [vmem:[%s289 + $0x28] sm:%s281] %v310
                  %v312 = vld [vmem:[%s288 + $0x4c] sm:%s281]
                  %313 = vst [vmem:[%s289 + $0x2c] sm:%s281] %v312
                  %v314 = vld [vmem:[%s288 + $0x60] sm:%s281]
                  %315 = vst [vmem:[%s289 + $0x30] sm:%s281] %v314
                  %v316 = vld [vmem:[%s288 + $0x64] sm:%s281]
                  %317 = vst [vmem:[%s289 + $0x34] sm:%s281] %v316
                  %v318 = vld [vmem:[%s288 + $0x68] sm:%s281]
                  %319 = vst [vmem:[%s289 + $0x38] sm:%s281] %v318
                  %v320 = vld [vmem:[%s288 + $0x6c] sm:%s281]
                  %321 = vst [vmem:[%s289 + $0x3c] sm:%s281] %v320
                  %v322 = vld [vmem:[%s288 + $0x80] sm:%s281]
                  %323 = vst [vmem:[%s289 + $0x40] sm:%s281] %v322
                  %v324 = vld [vmem:[%s288 + $0x84] sm:%s281]
                  %325 = vst [vmem:[%s289 + $0x44] sm:%s281] %v324
                  %v326 = vld [vmem:[%s288 + $0x88] sm:%s281]
                  %327 = vst [vmem:[%s289 + $0x48] sm:%s281] %v326
                  %v328 = vld [vmem:[%s288 + $0x8c] sm:%s281]
                  %329 = vst [vmem:[%s289 + $0x4c] sm:%s281] %v328
                  %v330 = vld [vmem:[%s288 + $0xa0] sm:%s281]
                  %331 = vst [vmem:[%s289 + $0x50] sm:%s281] %v330
                  %v332 = vld [vmem:[%s288 + $0xa4] sm:%s281]
                  %333 = vst [vmem:[%s289 + $0x54] sm:%s281] %v332
                  %v334 = vld [vmem:[%s288 + $0xa8] sm:%s281]
                  %335 = vst [vmem:[%s289 + $0x58] sm:%s281] %v334
                  %v336 = vld [vmem:[%s288 + $0xac] sm:%s281]
                  %337 = vst [vmem:[%s289 + $0x5c] sm:%s281] %v336
                  %v338 = vld [vmem:[%s288 + $0xc0] sm:%s281]
                  %339 = vst [vmem:[%s289 + $0x60] sm:%s281] %v338
                  %v340 = vld [vmem:[%s288 + $0xc4] sm:%s281]
                  %341 = vst [vmem:[%s289 + $0x64] sm:%s281] %v340
                  %v342 = vld [vmem:[%s288 + $0xc8] sm:%s281]
                  %343 = vst [vmem:[%s289 + $0x68] sm:%s281] %v342
                  %v344 = vld [vmem:[%s288 + $0xcc] sm:%s281]
                  %345 = vst [vmem:[%s289 + $0x6c] sm:%s281] %v344
                  %v346 = vld [vmem:[%s288 + $0xe0] sm:%s281]
                  %347 = vst [vmem:[%s289 + $0x70] sm:%s281] %v346
                  %v348 = vld [vmem:[%s288 + $0xe4] sm:%s281]
                  %349 = vst [vmem:[%s289 + $0x74] sm:%s281] %v348
                  %v350 = vld [vmem:[%s288 + $0xe8] sm:%s281]
                  %351 = vst [vmem:[%s289 + $0x78] sm:%s281] %v350
                  %v352 = vld [vmem:[%s288 + $0xec] sm:%s281]
                  %353 = vst [vmem:[%s289 + $0x7c] sm:%s281] %v352
                $region67: #{vector_simulator_forward.1} parent=54 // loop_footer
                  %s287 = sadd.s32 1, %s283
                $region68: #{vector_simulator_forward.1} parent=54 // loop_footer_branch
                  %282 = sbr.rel target = $region64
                $region69: #{vector_simulator_forward.1} parent=54 // loop_exit
                  _
              $region55: #{vector_simulator_forward.1} parent=39 // pred_fallthru
                _
            $region40: #{vector_simulator_forward.1} parent=35 // pred_fallthru
              _
            // Predicated region
            $region41: #{vector_simulator_forward.1} parent=35 // pred_check
              _
            $region42: #{vector_simulator_forward.1} parent=35 // pred_check_branch
              %195 = sbr.rel (0) target = $region44
            $region43: #{vector_simulator_forward.1} parent=35 // pred_region
              %s197 = ssub.s32 16, 1
              loop: start=0, step=1, limit=1
              $region45: #{vector_simulator_forward.1} parent=43 // loop_pre_header
                _
              $region46: #{vector_simulator_forward.1} parent=43 // loop_header
                %s199 = sphi 0, %s203
                %p200 = scmp.ge.s32.totalorder %s199, 1
                %s204 = sphi %s189, %s189
                %s205 = sphi %s186, %s186
              $region47: #{vector_simulator_forward.1} parent=43 // loop_header_branch
                %202 = sbr.rel (%p200) target = $region51
              $region48: #{vector_simulator_forward.1} parent=43 // loop_body
                %v206 = vld [vmem:[%s204] sm:%s197]
                %207 = vst [vmem:[%s205] sm:%s197] %v206
                %v208 = vld [vmem:[%s204 + $0x4] sm:%s197]
                %209 = vst [vmem:[%s205 + $0x4] sm:%s197] %v208
                %v210 = vld [vmem:[%s204 + $0x8] sm:%s197]
                %211 = vst [vmem:[%s205 + $0x8] sm:%s197] %v210
                %v212 = vld [vmem:[%s204 + $0xc] sm:%s197]
                %213 = vst [vmem:[%s205 + $0xc] sm:%s197] %v212
                %v214 = vld [vmem:[%s204 + $0x20] sm:%s197]
                %215 = vst [vmem:[%s205 + $0x10] sm:%s197] %v214
                %v216 = vld [vmem:[%s204 + $0x24] sm:%s197]
                %217 = vst [vmem:[%s205 + $0x14] sm:%s197] %v216
                %v218 = vld [vmem:[%s204 + $0x28] sm:%s197]
                %219 = vst [vmem:[%s205 + $0x18] sm:%s197] %v218
                %v220 = vld [vmem:[%s204 + $0x2c] sm:%s197]
                %221 = vst [vmem:[%s205 + $0x1c] sm:%s197] %v220
                %v222 = vld [vmem:[%s204 + $0x40] sm:%s197]
                %223 = vst [vmem:[%s205 + $0x20] sm:%s197] %v222
                %v224 = vld [vmem:[%s204 + $0x44] sm:%s197]
                %225 = vst [vmem:[%s205 + $0x24] sm:%s197] %v224
                %v226 = vld [vmem:[%s204 + $0x48] sm:%s197]
                %227 = vst [vmem:[%s205 + $0x28] sm:%s197] %v226
                %v228 = vld [vmem:[%s204 + $0x4c] sm:%s197]
                %229 = vst [vmem:[%s205 + $0x2c] sm:%s197] %v228
                %v230 = vld [vmem:[%s204 + $0x60] sm:%s197]
                %231 = vst [vmem:[%s205 + $0x30] sm:%s197] %v230
                %v232 = vld [vmem:[%s204 + $0x64] sm:%s197]
                %233 = vst [vmem:[%s205 + $0x34] sm:%s197] %v232
                %v234 = vld [vmem:[%s204 + $0x68] sm:%s197]
                %235 = vst [vmem:[%s205 + $0x38] sm:%s197] %v234
                %v236 = vld [vmem:[%s204 + $0x6c] sm:%s197]
                %237 = vst [vmem:[%s205 + $0x3c] sm:%s197] %v236
                %v238 = vld [vmem:[%s204 + $0x80] sm:%s197]
                %239 = vst [vmem:[%s205 + $0x40] sm:%s197] %v238
                %v240 = vld [vmem:[%s204 + $0x84] sm:%s197]
                %241 = vst [vmem:[%s205 + $0x44] sm:%s197] %v240
                %v242 = vld [vmem:[%s204 + $0x88] sm:%s197]
                %243 = vst [vmem:[%s205 + $0x48] sm:%s197] %v242
                %v244 = vld [vmem:[%s204 + $0x8c] sm:%s197]
                %245 = vst [vmem:[%s205 + $0x4c] sm:%s197] %v244
                %v246 = vld [vmem:[%s204 + $0xa0] sm:%s197]
                %247 = vst [vmem:[%s205 + $0x50] sm:%s197] %v246
                %v248 = vld [vmem:[%s204 + $0xa4] sm:%s197]
                %249 = vst [vmem:[%s205 + $0x54] sm:%s197] %v248
                %v250 = vld [vmem:[%s204 + $0xa8] sm:%s197]
                %251 = vst [vmem:[%s205 + $0x58] sm:%s197] %v250
                %v252 = vld [vmem:[%s204 + $0xac] sm:%s197]
                %253 = vst [vmem:[%s205 + $0x5c] sm:%s197] %v252
                %v254 = vld [vmem:[%s204 + $0xc0] sm:%s197]
                %255 = vst [vmem:[%s205 + $0x60] sm:%s197] %v254
                %v256 = vld [vmem:[%s204 + $0xc4] sm:%s197]
                %257 = vst [vmem:[%s205 + $0x64] sm:%s197] %v256
                %v258 = vld [vmem:[%s204 + $0xc8] sm:%s197]
                %259 = vst [vmem:[%s205 + $0x68] sm:%s197] %v258
                %v260 = vld [vmem:[%s204 + $0xcc] sm:%s197]
                %261 = vst [vmem:[%s205 + $0x6c] sm:%s197] %v260
                %v262 = vld [vmem:[%s204 + $0xe0] sm:%s197]
                %263 = vst [vmem:[%s205 + $0x70] sm:%s197] %v262
                %v264 = vld [vmem:[%s204 + $0xe4] sm:%s197]
                %265 = vst [vmem:[%s205 + $0x74] sm:%s197] %v264
                %v266 = vld [vmem:[%s204 + $0xe8] sm:%s197]
                %267 = vst [vmem:[%s205 + $0x78] sm:%s197] %v266
                %v268 = vld [vmem:[%s204 + $0xec] sm:%s197]
                %269 = vst [vmem:[%s205 + $0x7c] sm:%s197] %v268
              $region49: #{vector_simulator_forward.1} parent=43 // loop_footer
                %s203 = sadd.s32 1, %s199
              $region50: #{vector_simulator_forward.1} parent=43 // loop_footer_branch
                %198 = sbr.rel target = $region46
              $region51: #{vector_simulator_forward.1} parent=43 // loop_exit
                _
            $region44: #{vector_simulator_forward.1} parent=35 // pred_fallthru
              _
          $region36: #{vector_simulator_forward.1} parent=31 // pred_fallthru
            _
          %354 = vnop
        $region32: #{vector_simulator_forward.1} parent=27 // pred_fallthru
          _
        // Predicated region
        $region70: #{vector_simulator_forward.1} parent=27 // pred_check
          %p355 = pneg %p120
        $region71: #{vector_simulator_forward.1} parent=27 // pred_check_branch
          %357 = sbr.rel (%p355) target = $region73
        $region72: #{vector_simulator_forward.1} parent=27 // pred_region
          %s358 = smul.u32 4, %s11
          %p359 = scmp.lt.s32.totalorder %s358, 7
          %s360 = scalar_select %p359, %s358, 7
          %s361 = smul.addr %s360, 8
          %s362 = scalar_lea.vmem %s4, %s361
          %s363 = smul.u32 4, %s11
        $region73: #{vector_simulator_forward.1} parent=27 // pred_fallthru
          _
      $region28: #{vector_simulator_forward.1} parent=5 // pred_fallthru
        _
      %p364 = scmp.le.s32.totalorder 1, %s11
      %p365 = scmp.lt.s32.totalorder %s11, 3
      %p366 = pnand %p364, %p365
      %p367 = pneg %p366
      // Predicated region
      $region74: #{vector_simulator_forward.1} parent=5 // pred_check
        _
      $region75: #{vector_simulator_forward.1} parent=5 // pred_check_branch
        %369 = sbr.rel (%p366) target = $region77
      $region76: #{vector_simulator_forward.1} parent=5 // pred_region
        %s370 = ssub.s32 %s11, 1
        %s371 = sand.u32 %s24, 1
        %s372 = sand.u32 %s24, 1
        %s373 = smul.addr %s372, 128
        %s374 = scalar_lea.vmem [#allocation2], %s373
        // Predicated region
        $region78: #{vector_simulator_forward.1} parent=76 // pred_check
          %p375 = pneg %p37
        $region79: #{vector_simulator_forward.1} parent=76 // pred_check_branch
          %377 = sbr.rel (%p375) target = $region81
        $region80: #{vector_simulator_forward.1} parent=76 // pred_region
          _
        $region81: #{vector_simulator_forward.1} parent=76 // pred_fallthru
          _
        %s378 = sand.u32 %s24, 1
        %s379 = sand.u32 %s24, 1
        %s380 = smul.addr %s379, 128
        %s381 = scalar_lea.vmem [#allocation2], %s380
        %p382 = pneg %p37
        %p383 = pneg %p34
        %p384 = pneg %p58
        %p385 = pneg %p55
        %p386 = pneg %p79
        %p387 = pneg %p76
        %p388 = pneg %p100
        %p389 = pneg %p97
        %s390 = smul.u32 4, %s16
        %p391 = scmp.lt.s32.totalorder %s390, 7
        %s392 = scalar_select %p391, %s390, 7
        %s393 = smul.addr %s392, 8
        %s394 = scalar_lea.vmem %s4, %s393
        %p395 = pneg %p126
        %p396 = pneg %p123
        %p397 = pneg %p152
        %p398 = pneg %p149
        %s399 = smul.u32 4, %s16
        %p400 = scmp.lt.s32.totalorder %s399, 7
        %s401 = scalar_select %p400, %s399, 7
        %s402 = smul.addr %s401, 8
        %s403 = scalar_lea.vmem %s5, %s402
        %s404 = smul.u32 4, %s16
        %s405 = smul.u32 4, %s16
        %p406 = scmp.lt.s32.totalorder %s405, 7
        %s407 = scalar_select %p406, %s405, 7
        %s408 = smul.addr %s407, 8
        %s409 = scalar_lea.vmem %s4, %s408
        %s410 = smul.u32 4, %s16
        %s411 = smul.u32 4, %s16
        %p412 = scmp.lt.s32.totalorder %s411, 7
        %s413 = scalar_select %p412, %s411, 7
        %s414 = smul.addr %s413, 8
        %s415 = scalar_lea.vmem %s5, %s414
        %s416 = smul.u32 4, %s16
        %v418 = vld [vmem:[%s1] sm:$0xf]
        %v419 = vld [vmem:[%s1 + $0x4] sm:$0xf]
        %v420 = vld [vmem:[%s1 + $0x8] sm:$0xf]
        %v421 = vld [vmem:[%s1 + $0xc] sm:$0xf]
        %v422 = vld [vmem:[%s2] sm:$0x1]
        %v423 = vld [vmem:[%s374] sm:$0xf]
        %v424 = vld [vmem:[%s374 + $0x4] sm:$0xf]
        %v425 = vld [vmem:[%s374 + $0x8] sm:$0xf]
        %v426 = vld [vmem:[%s374 + $0xc] sm:$0xf]
        %v428 = vlaneseq
        %v429 = vshrl.u32 %v428, 7
        %v430 = vsub.s32 0, %v429
        %v431 = vrot.slane %v422, %v430
        %v437 = vunpack.c.l.b16 %v423
        %v438 = vunpack.c.l.b16 %v424
        %v439 = vunpack.c.l.b16 %v425
        %v440 = vunpack.c.l.b16 %v426
        %v441 = vpack.c.b16 %v438, %v437
        %v442 = vpack.c.b16 %v440, %v439
        %v447 = vunpack.c.l.b16 %v418
        %v448 = vunpack.c.l.b16 %v419
        %v449 = vunpack.c.l.b16 %v420
        %v450 = vunpack.c.l.b16 %v421
        %v451 = vpack.c.b16 %v448, %v447
        %v452 = vpack.c.b16 %v450, %v449
        %vm455 = vcmask 261120
        %v457 = vsel %vm455, %v441, 0
        %v460 = vsel %vm455, %v442, 0
        %462 = vmatprep.subr.bf16.mxu0 0
        %463 = vmatpush1.bf16.msra.mxu0 0
        %464 = vmatprep.subr.bf16.mxu0 0
        %465 = vmatpush1.bf16.msra.mxu0 0
        %466 = vmatprep.subr.bf16.mxu0 0
        %467 = vmatpush1.bf16.msra.mxu0 0
        %468 = vmatprep.subr.bf16.mxu0 0
        %469 = vmatpush1.bf16.msra.mxu0 0
        %470 = vmatprep.subr.bf16.mxu0 0
        %471 = vmatpush1.bf16.msra.mxu0 0
        %472 = vmatprep.subr.bf16.mxu0 0
        %473 = vmatpush1.bf16.msra.mxu0 0
        %474 = vmatprep.subr.bf16.mxu0 0
        %475 = vmatpush1.bf16.msra.mxu0 %v452
        %476 = vmatprep.subr.bf16.mxu0 0
        %477 = vmatpush1.bf16.msra.mxu0 %v451
        %478 = vmatprep.subr.bf16.mxu0 0
        %479 = vmatpush2.bf16.msra.mxu0 0
        %480 = vmatprep.subr.bf16.mxu0 0
        %481 = vmatpush2.bf16.msra.mxu0 0
        %482 = vmatprep.subr.bf16.mxu0 0
        %483 = vmatpush2.bf16.msra.mxu0 0
        %484 = vmatprep.subr.bf16.mxu0 0
        %485 = vmatpush2.bf16.msra.mxu0 0
        %486 = vmatprep.subr.bf16.mxu0 0
        %487 = vmatpush2.bf16.msra.mxu0 0
        %488 = vmatprep.subr.bf16.mxu0 0
        %489 = vmatpush2.bf16.msra.mxu0 0
        %490 = vmatprep.subr.bf16.mxu0 0
        %491 = vmatpush2.bf16.msra.mxu0 0
        %492 = vmatprep.subr.bf16.mxu0 0
        %493 = vmatpush2.bf16.msra.mxu0 0
        %494 = vmatprep.mubr.bf16.mxu0 0
        %495 = vmatmul.mubr.bf16.gmra.mxu0 %v457
        %v496 = vpop.f32.mrf.mxu0
        %v497 = vadd.f32 %v431, %v496
        %v498 = vpop.f32.mrf.mxu0
        %v499 = vpop.f32.mrf.mxu0
        %v500 = vadd.f32 %v431, %v499
        %v501 = vpop.f32.mrf.mxu0
        %502 = vmatprep.mubr.bf16.mxu0 0
        %503 = vmatmul.mubr.bf16.gmra.mxu0 %v460
        %v504 = vpop.f32.mrf.mxu0
        %v505 = vadd.f32 %v431, %v504
        %v506 = vpop.f32.mrf.mxu0
        %v507 = vpop.f32.mrf.mxu0
        %v508 = vadd.f32 %v431, %v507
        %v509 = vpop.f32.mrf.mxu0
        %510 = vdwg.mxu0
        %v511 = vmax.f32 %v497, 0.0
        %v512 = vmax.f32 %v500, 0.0
        %v513 = vmax.f32 %v505, 0.0
        %v514 = vmax.f32 %v508, 0.0
        %v515 = vadd.f32 %v511, 0.0
        %v516 = vadd.f32 %v512, 0.0
        %v517 = vadd.f32 %v513, 0.0
        %v518 = vadd.f32 %v514, 0.0
        %s519 = scalar_lea.vmem %s374, 16 [#allocation2]
        %v520 = vld [vmem:[%s519] sm:$0xf]
        %v521 = vld [vmem:[%s519 + $0x4] sm:$0xf]
        %v522 = vld [vmem:[%s519 + $0x8] sm:$0xf]
        %v523 = vld [vmem:[%s519 + $0xc] sm:$0xf]
        %v528 = vunpack.c.l.b16 %v520
        %v529 = vunpack.c.l.b16 %v521
        %v530 = vunpack.c.l.b16 %v522
        %v531 = vunpack.c.l.b16 %v523
        %v532 = vpack.c.b16 %v529, %v528
        %v533 = vpack.c.b16 %v531, %v530
        %v535 = vsel %vm455, %v532, 0
        %v538 = vsel %vm455, %v533, 0
        %540 = vmatprep.subr.bf16.mxu0 0
        %541 = vmatpush1.bf16.msra.mxu0 0
        %542 = vmatprep.subr.bf16.mxu0 0
        %543 = vmatpush1.bf16.msra.mxu0 0
        %544 = vmatprep.subr.bf16.mxu0 0
        %545 = vmatpush1.bf16.msra.mxu0 0
        %546 = vmatprep.subr.bf16.mxu0 0
        %547 = vmatpush1.bf16.msra.mxu0 0
        %548 = vmatprep.subr.bf16.mxu0 0
        %549 = vmatpush1.bf16.msra.mxu0 0
        %550 = vmatprep.subr.bf16.mxu0 0
        %551 = vmatpush1.bf16.msra.mxu0 0
        %552 = vmatprep.subr.bf16.mxu0 0
        %553 = vmatpush1.bf16.msra.mxu0 %v452
        %554 = vmatprep.subr.bf16.mxu0 0
        %555 = vmatpush1.bf16.msra.mxu0 %v451
        %556 = vmatprep.subr.bf16.mxu0 0
        %557 = vmatpush2.bf16.msra.mxu0 0
        %558 = vmatprep.subr.bf16.mxu0 0
        %559 = vmatpush2.bf16.msra.mxu0 0
        %560 = vmatprep.subr.bf16.mxu0 0
        %561 = vmatpush2.bf16.msra.mxu0 0
        %562 = vmatprep.subr.bf16.mxu0 0
        %563 = vmatpush2.bf16.msra.mxu0 0
        %564 = vmatprep.subr.bf16.mxu0 0
        %565 = vmatpush2.bf16.msra.mxu0 0
        %566 = vmatprep.subr.bf16.mxu0 0
        %567 = vmatpush2.bf16.msra.mxu0 0
        %568 = vmatprep.subr.bf16.mxu0 0
        %569 = vmatpush2.bf16.msra.mxu0 0
        %570 = vmatprep.subr.bf16.mxu0 0
        %571 = vmatpush2.bf16.msra.mxu0 0
        %572 = vmatprep.mubr.bf16.mxu0 0
        %573 = vmatmul.mubr.bf16.gmra.mxu0 %v535
        %v574 = vpop.f32.mrf.mxu0
        %v575 = vadd.f32 %v431, %v574
        %v576 = vpop.f32.mrf.mxu0
        %v577 = vpop.f32.mrf.mxu0
        %v578 = vadd.f32 %v431, %v577
        %v579 = vpop.f32.mrf.mxu0
        %580 = vmatprep.mubr.bf16.mxu0 0
        %581 = vmatmul.mubr.bf16.gmra.mxu0 %v538
        %v582 = vpop.f32.mrf.mxu0
        %v583 = vadd.f32 %v431, %v582
        %v584 = vpop.f32.mrf.mxu0
        %v585 = vpop.f32.mrf.mxu0
        %v586 = vadd.f32 %v431, %v585
        %v587 = vpop.f32.mrf.mxu0
        %588 = vdwg.mxu0
        %v589 = vmax.f32 %v575, 0.0
        %v590 = vmax.f32 %v578, 0.0
        %v591 = vmax.f32 %v583, 0.0
        %v592 = vmax.f32 %v586, 0.0
        %v593 = vadd.f32 %v515, %v589
        %v594 = vadd.f32 %v516, %v590
        %v595 = vadd.f32 %v517, %v591
        %v596 = vadd.f32 %v518, %v592
        %s597 = scalar_lea.vmem %s374, 32 [#allocation2]
        %v598 = vld [vmem:[%s597] sm:$0xf]
        %v599 = vld [vmem:[%s597 + $0x4] sm:$0xf]
        %v600 = vld [vmem:[%s597 + $0x8] sm:$0xf]
        %v601 = vld [vmem:[%s597 + $0xc] sm:$0xf]
        %v606 = vunpack.c.l.b16 %v598
        %v607 = vunpack.c.l.b16 %v599
        %v608 = vunpack.c.l.b16 %v600
        %v609 = vunpack.c.l.b16 %v601
        %v610 = vpack.c.b16 %v607, %v606
        %v611 = vpack.c.b16 %v609, %v608
        %v613 = vsel %vm455, %v610, 0
        %v616 = vsel %vm455, %v611, 0
        %618 = vmatprep.subr.bf16.mxu0 0
        %619 = vmatpush1.bf16.msra.mxu0 0
        %620 = vmatprep.subr.bf16.mxu0 0
        %621 = vmatpush1.bf16.msra.mxu0 0
        %622 = vmatprep.subr.bf16.mxu0 0
        %623 = vmatpush1.bf16.msra.mxu0 0
        %624 = vmatprep.subr.bf16.mxu0 0
        %625 = vmatpush1.bf16.msra.mxu0 0
        %626 = vmatprep.subr.bf16.mxu0 0
        %627 = vmatpush1.bf16.msra.mxu0 0
        %628 = vmatprep.subr.bf16.mxu0 0
        %629 = vmatpush1.bf16.msra.mxu0 0
        %630 = vmatprep.subr.bf16.mxu0 0
        %631 = vmatpush1.bf16.msra.mxu0 %v452
        %632 = vmatprep.subr.bf16.mxu0 0
        %633 = vmatpush1.bf16.msra.mxu0 %v451
        %634 = vmatprep.subr.bf16.mxu0 0
        %635 = vmatpush2.bf16.msra.mxu0 0
        %636 = vmatprep.subr.bf16.mxu0 0
        %637 = vmatpush2.bf16.msra.mxu0 0
        %638 = vmatprep.subr.bf16.mxu0 0
        %639 = vmatpush2.bf16.msra.mxu0 0
        %640 = vmatprep.subr.bf16.mxu0 0
        %641 = vmatpush2.bf16.msra.mxu0 0
        %642 = vmatprep.subr.bf16.mxu0 0
        %643 = vmatpush2.bf16.msra.mxu0 0
        %644 = vmatprep.subr.bf16.mxu0 0
        %645 = vmatpush2.bf16.msra.mxu0 0
        %646 = vmatprep.subr.bf16.mxu0 0
        %647 = vmatpush2.bf16.msra.mxu0 0
        %648 = vmatprep.subr.bf16.mxu0 0
        %649 = vmatpush2.bf16.msra.mxu0 0
        %650 = vmatprep.mubr.bf16.mxu0 0
        %651 = vmatmul.mubr.bf16.gmra.mxu0 %v613
        %v652 = vpop.f32.mrf.mxu0
        %v653 = vadd.f32 %v431, %v652
        %v654 = vpop.f32.mrf.mxu0
        %v655 = vpop.f32.mrf.mxu0
        %v656 = vadd.f32 %v431, %v655
        %v657 = vpop.f32.mrf.mxu0
        %658 = vmatprep.mubr.bf16.mxu0 0
        %659 = vmatmul.mubr.bf16.gmra.mxu0 %v616
        %v660 = vpop.f32.mrf.mxu0
        %v661 = vadd.f32 %v431, %v660
        %v662 = vpop.f32.mrf.mxu0
        %v663 = vpop.f32.mrf.mxu0
        %v664 = vadd.f32 %v431, %v663
        %v665 = vpop.f32.mrf.mxu0
        %666 = vdwg.mxu0
        %v667 = vmax.f32 %v653, 0.0
        %v668 = vmax.f32 %v656, 0.0
        %v669 = vmax.f32 %v661, 0.0
        %v670 = vmax.f32 %v664, 0.0
        %v671 = vadd.f32 %v593, %v667
        %v672 = vadd.f32 %v594, %v668
        %v673 = vadd.f32 %v595, %v669
        %v674 = vadd.f32 %v596, %v670
        %s675 = scalar_lea.vmem %s374, 48 [#allocation2]
        %v676 = vld [vmem:[%s675] sm:$0xf]
        %v677 = vld [vmem:[%s675 + $0x4] sm:$0xf]
        %v678 = vld [vmem:[%s675 + $0x8] sm:$0xf]
        %v679 = vld [vmem:[%s675 + $0xc] sm:$0xf]
        %v684 = vunpack.c.l.b16 %v676
        %v685 = vunpack.c.l.b16 %v677
        %v686 = vunpack.c.l.b16 %v678
        %v687 = vunpack.c.l.b16 %v679
        %v688 = vpack.c.b16 %v685, %v684
        %v689 = vpack.c.b16 %v687, %v686
        %v691 = vsel %vm455, %v688, 0
        %v694 = vsel %vm455, %v689, 0
        %696 = vmatprep.subr.bf16.mxu0 0
        %697 = vmatpush1.bf16.msra.mxu0 0
        %698 = vmatprep.subr.bf16.mxu0 0
        %699 = vmatpush1.bf16.msra.mxu0 0
        %700 = vmatprep.subr.bf16.mxu0 0
        %701 = vmatpush1.bf16.msra.mxu0 0
        %702 = vmatprep.subr.bf16.mxu0 0
        %703 = vmatpush1.bf16.msra.mxu0 0
        %704 = vmatprep.subr.bf16.mxu0 0
        %705 = vmatpush1.bf16.msra.mxu0 0
        %706 = vmatprep.subr.bf16.mxu0 0
        %707 = vmatpush1.bf16.msra.mxu0 0
        %708 = vmatprep.subr.bf16.mxu0 0
        %709 = vmatpush1.bf16.msra.mxu0 %v452
        %710 = vmatprep.subr.bf16.mxu0 0
        %711 = vmatpush1.bf16.msra.mxu0 %v451
        %712 = vmatprep.subr.bf16.mxu0 0
        %713 = vmatpush2.bf16.msra.mxu0 0
        %714 = vmatprep.subr.bf16.mxu0 0
        %715 = vmatpush2.bf16.msra.mxu0 0
        %716 = vmatprep.subr.bf16.mxu0 0
        %717 = vmatpush2.bf16.msra.mxu0 0
        %718 = vmatprep.subr.bf16.mxu0 0
        %719 = vmatpush2.bf16.msra.mxu0 0
        %720 = vmatprep.subr.bf16.mxu0 0
        %721 = vmatpush2.bf16.msra.mxu0 0
        %722 = vmatprep.subr.bf16.mxu0 0
        %723 = vmatpush2.bf16.msra.mxu0 0
        %724 = vmatprep.subr.bf16.mxu0 0
        %725 = vmatpush2.bf16.msra.mxu0 0
        %726 = vmatprep.subr.bf16.mxu0 0
        %727 = vmatpush2.bf16.msra.mxu0 0
        %728 = vmatprep.mubr.bf16.mxu0 0
        %729 = vmatmul.mubr.bf16.gmra.mxu0 %v691
        %v730 = vpop.f32.mrf.mxu0
        %v731 = vadd.f32 %v431, %v730
        %v732 = vpop.f32.mrf.mxu0
        %v733 = vpop.f32.mrf.mxu0
        %v734 = vadd.f32 %v431, %v733
        %v735 = vpop.f32.mrf.mxu0
        %736 = vmatprep.mubr.bf16.mxu0 0
        %737 = vmatmul.mubr.bf16.gmra.mxu0 %v694
        %v738 = vpop.f32.mrf.mxu0
        %v739 = vadd.f32 %v431, %v738
        %v740 = vpop.f32.mrf.mxu0
        %v741 = vpop.f32.mrf.mxu0
        %v742 = vadd.f32 %v431, %v741
        %v743 = vpop.f32.mrf.mxu0
        %744 = vdwg.mxu0
        %v745 = vmax.f32 %v731, 0.0
        %v746 = vmax.f32 %v734, 0.0
        %v747 = vmax.f32 %v739, 0.0
        %v748 = vmax.f32 %v742, 0.0
        %v749 = vadd.f32 %v671, %v745
        %v750 = vadd.f32 %v672, %v746
        %v751 = vadd.f32 %v673, %v747
        %v752 = vadd.f32 %v674, %v748
        %s753 = scalar_lea.vmem %s374, 64 [#allocation2]
        %v754 = vld [vmem:[%s753] sm:$0xf]
        %v755 = vld [vmem:[%s753 + $0x4] sm:$0xf]
        %v756 = vld [vmem:[%s753 + $0x8] sm:$0xf]
        %v757 = vld [vmem:[%s753 + $0xc] sm:$0xf]
        %v762 = vunpack.c.l.b16 %v754
        %v763 = vunpack.c.l.b16 %v755
        %v764 = vunpack.c.l.b16 %v756
        %v765 = vunpack.c.l.b16 %v757
        %v766 = vpack.c.b16 %v763, %v762
        %v767 = vpack.c.b16 %v765, %v764
        %v769 = vsel %vm455, %v766, 0
        %v772 = vsel %vm455, %v767, 0
        %774 = vmatprep.subr.bf16.mxu0 0
        %775 = vmatpush1.bf16.msra.mxu0 0
        %776 = vmatprep.subr.bf16.mxu0 0
        %777 = vmatpush1.bf16.msra.mxu0 0
        %778 = vmatprep.subr.bf16.mxu0 0
        %779 = vmatpush1.bf16.msra.mxu0 0
        %780 = vmatprep.subr.bf16.mxu0 0
        %781 = vmatpush1.bf16.msra.mxu0 0
        %782 = vmatprep.subr.bf16.mxu0 0
        %783 = vmatpush1.bf16.msra.mxu0 0
        %784 = vmatprep.subr.bf16.mxu0 0
        %785 = vmatpush1.bf16.msra.mxu0 0
        %786 = vmatprep.subr.bf16.mxu0 0
        %787 = vmatpush1.bf16.msra.mxu0 %v452
        %788 = vmatprep.subr.bf16.mxu0 0
        %789 = vmatpush1.bf16.msra.mxu0 %v451
        %790 = vmatprep.subr.bf16.mxu0 0
        %791 = vmatpush2.bf16.msra.mxu0 0
        %792 = vmatprep.subr.bf16.mxu0 0
        %793 = vmatpush2.bf16.msra.mxu0 0
        %794 = vmatprep.subr.bf16.mxu0 0
        %795 = vmatpush2.bf16.msra.mxu0 0
        %796 = vmatprep.subr.bf16.mxu0 0
        %797 = vmatpush2.bf16.msra.mxu0 0
        %798 = vmatprep.subr.bf16.mxu0 0
        %799 = vmatpush2.bf16.msra.mxu0 0
        %800 = vmatprep.subr.bf16.mxu0 0
        %801 = vmatpush2.bf16.msra.mxu0 0
        %802 = vmatprep.subr.bf16.mxu0 0
        %803 = vmatpush2.bf16.msra.mxu0 0
        %804 = vmatprep.subr.bf16.mxu0 0
        %805 = vmatpush2.bf16.msra.mxu0 0
        %806 = vmatprep.mubr.bf16.mxu0 0
        %807 = vmatmul.mubr.bf16.gmra.mxu0 %v769
        %v808 = vpop.f32.mrf.mxu0
        %v809 = vadd.f32 %v431, %v808
        %v810 = vpop.f32.mrf.mxu0
        %v811 = vpop.f32.mrf.mxu0
        %v812 = vadd.f32 %v431, %v811
        %v813 = vpop.f32.mrf.mxu0
        %814 = vmatprep.mubr.bf16.mxu0 0
        %815 = vmatmul.mubr.bf16.gmra.mxu0 %v772
        %v816 = vpop.f32.mrf.mxu0
        %v817 = vadd.f32 %v431, %v816
        %v818 = vpop.f32.mrf.mxu0
        %v819 = vpop.f32.mrf.mxu0
        %v820 = vadd.f32 %v431, %v819
        %v821 = vpop.f32.mrf.mxu0
        %822 = vdwg.mxu0
        %v823 = vmax.f32 %v809, 0.0
        %v824 = vmax.f32 %v812, 0.0
        %v825 = vmax.f32 %v817, 0.0
        %v826 = vmax.f32 %v820, 0.0
        %v827 = vadd.f32 %v749, %v823
        %v828 = vadd.f32 %v750, %v824
        %v829 = vadd.f32 %v751, %v825
        %v830 = vadd.f32 %v752, %v826
        %s831 = scalar_lea.vmem %s374, 80 [#allocation2]
        %v832 = vld [vmem:[%s831] sm:$0xf]
        %v833 = vld [vmem:[%s831 + $0x4] sm:$0xf]
        %v834 = vld [vmem:[%s831 + $0x8] sm:$0xf]
        %v835 = vld [vmem:[%s831 + $0xc] sm:$0xf]
        %v840 = vunpack.c.l.b16 %v832
        %v841 = vunpack.c.l.b16 %v833
        %v842 = vunpack.c.l.b16 %v834
        %v843 = vunpack.c.l.b16 %v835
        %v844 = vpack.c.b16 %v841, %v840
        %v845 = vpack.c.b16 %v843, %v842
        %v847 = vsel %vm455, %v844, 0
        %v850 = vsel %vm455, %v845, 0
        %852 = vmatprep.subr.bf16.mxu0 0
        %853 = vmatpush1.bf16.msra.mxu0 0
        %854 = vmatprep.subr.bf16.mxu0 0
        %855 = vmatpush1.bf16.msra.mxu0 0
        %856 = vmatprep.subr.bf16.mxu0 0
        %857 = vmatpush1.bf16.msra.mxu0 0
        %858 = vmatprep.subr.bf16.mxu0 0
        %859 = vmatpush1.bf16.msra.mxu0 0
        %860 = vmatprep.subr.bf16.mxu0 0
        %861 = vmatpush1.bf16.msra.mxu0 0
        %862 = vmatprep.subr.bf16.mxu0 0
        %863 = vmatpush1.bf16.msra.mxu0 0
        %864 = vmatprep.subr.bf16.mxu0 0
        %865 = vmatpush1.bf16.msra.mxu0 %v452
        %866 = vmatprep.subr.bf16.mxu0 0
        %867 = vmatpush1.bf16.msra.mxu0 %v451
        %868 = vmatprep.subr.bf16.mxu0 0
        %869 = vmatpush2.bf16.msra.mxu0 0
        %870 = vmatprep.subr.bf16.mxu0 0
        %871 = vmatpush2.bf16.msra.mxu0 0
        %872 = vmatprep.subr.bf16.mxu0 0
        %873 = vmatpush2.bf16.msra.mxu0 0
        %874 = vmatprep.subr.bf16.mxu0 0
        %875 = vmatpush2.bf16.msra.mxu0 0
        %876 = vmatprep.subr.bf16.mxu0 0
        %877 = vmatpush2.bf16.msra.mxu0 0
        %878 = vmatprep.subr.bf16.mxu0 0
        %879 = vmatpush2.bf16.msra.mxu0 0
        %880 = vmatprep.subr.bf16.mxu0 0
        %881 = vmatpush2.bf16.msra.mxu0 0
        %882 = vmatprep.subr.bf16.mxu0 0
        %883 = vmatpush2.bf16.msra.mxu0 0
        %884 = vmatprep.mubr.bf16.mxu0 0
        %885 = vmatmul.mubr.bf16.gmra.mxu0 %v847
        %v886 = vpop.f32.mrf.mxu0
        %v887 = vadd.f32 %v431, %v886
        %v888 = vpop.f32.mrf.mxu0
        %v889 = vpop.f32.mrf.mxu0
        %v890 = vadd.f32 %v431, %v889
        %v891 = vpop.f32.mrf.mxu0
        %892 = vmatprep.mubr.bf16.mxu0 0
        %893 = vmatmul.mubr.bf16.gmra.mxu0 %v850
        %v894 = vpop.f32.mrf.mxu0
        %v895 = vadd.f32 %v431, %v894
        %v896 = vpop.f32.mrf.mxu0
        %v897 = vpop.f32.mrf.mxu0
        %v898 = vadd.f32 %v431, %v897
        %v899 = vpop.f32.mrf.mxu0
        %900 = vdwg.mxu0
        %v901 = vmax.f32 %v887, 0.0
        %v902 = vmax.f32 %v890, 0.0
        %v903 = vmax.f32 %v895, 0.0
        %v904 = vmax.f32 %v898, 0.0
        %v905 = vadd.f32 %v827, %v901
        %v906 = vadd.f32 %v828, %v902
        %v907 = vadd.f32 %v829, %v903
        %v908 = vadd.f32 %v830, %v904
        %s909 = scalar_lea.vmem %s374, 96 [#allocation2]
        %v910 = vld [vmem:[%s909] sm:$0xf]
        %v911 = vld [vmem:[%s909 + $0x4] sm:$0xf]
        %v912 = vld [vmem:[%s909 + $0x8] sm:$0xf]
        %v913 = vld [vmem:[%s909 + $0xc] sm:$0xf]
        %v918 = vunpack.c.l.b16 %v910
        %v919 = vunpack.c.l.b16 %v911
        %v920 = vunpack.c.l.b16 %v912
        %v921 = vunpack.c.l.b16 %v913
        %v922 = vpack.c.b16 %v919, %v918
        %v923 = vpack.c.b16 %v921, %v920
        %v925 = vsel %vm455, %v922, 0
        %v928 = vsel %vm455, %v923, 0
        %930 = vmatprep.subr.bf16.mxu0 0
        %931 = vmatpush1.bf16.msra.mxu0 0
        %932 = vmatprep.subr.bf16.mxu0 0
        %933 = vmatpush1.bf16.msra.mxu0 0
        %934 = vmatprep.subr.bf16.mxu0 0
        %935 = vmatpush1.bf16.msra.mxu0 0
        %936 = vmatprep.subr.bf16.mxu0 0
        %937 = vmatpush1.bf16.msra.mxu0 0
        %938 = vmatprep.subr.bf16.mxu0 0
        %939 = vmatpush1.bf16.msra.mxu0 0
        %940 = vmatprep.subr.bf16.mxu0 0
        %941 = vmatpush1.bf16.msra.mxu0 0
        %942 = vmatprep.subr.bf16.mxu0 0
        %943 = vmatpush1.bf16.msra.mxu0 %v452
        %944 = vmatprep.subr.bf16.mxu0 0
        %945 = vmatpush1.bf16.msra.mxu0 %v451
        %946 = vmatprep.subr.bf16.mxu0 0
        %947 = vmatpush2.bf16.msra.mxu0 0
        %948 = vmatprep.subr.bf16.mxu0 0
        %949 = vmatpush2.bf16.msra.mxu0 0
        %950 = vmatprep.subr.bf16.mxu0 0
        %951 = vmatpush2.bf16.msra.mxu0 0
        %952 = vmatprep.subr.bf16.mxu0 0
        %953 = vmatpush2.bf16.msra.mxu0 0
        %954 = vmatprep.subr.bf16.mxu0 0
        %955 = vmatpush2.bf16.msra.mxu0 0
        %956 = vmatprep.subr.bf16.mxu0 0
        %957 = vmatpush2.bf16.msra.mxu0 0
        %958 = vmatprep.subr.bf16.mxu0 0
        %959 = vmatpush2.bf16.msra.mxu0 0
        %960 = vmatprep.subr.bf16.mxu0 0
        %961 = vmatpush2.bf16.msra.mxu0 0
        %962 = vmatprep.mubr.bf16.mxu0 0
        %963 = vmatmul.mubr.bf16.gmra.mxu0 %v925
        %v964 = vpop.f32.mrf.mxu0
        %v965 = vadd.f32 %v431, %v964
        %v966 = vpop.f32.mrf.mxu0
        %v967 = vpop.f32.mrf.mxu0
        %v968 = vadd.f32 %v431, %v967
        %v969 = vpop.f32.mrf.mxu0
        %970 = vmatprep.mubr.bf16.mxu0 0
        %971 = vmatmul.mubr.bf16.gmra.mxu0 %v928
        %v972 = vpop.f32.mrf.mxu0
        %v973 = vadd.f32 %v431, %v972
        %v974 = vpop.f32.mrf.mxu0
        %v975 = vpop.f32.mrf.mxu0
        %v976 = vadd.f32 %v431, %v975
        %v977 = vpop.f32.mrf.mxu0
        %978 = vdwg.mxu0
        %v979 = vmax.f32 %v965, 0.0
        %v980 = vmax.f32 %v968, 0.0
        %v981 = vmax.f32 %v973, 0.0
        %v982 = vmax.f32 %v976, 0.0
        %v983 = vadd.f32 %v905, %v979
        %v984 = vadd.f32 %v906, %v980
        %v985 = vadd.f32 %v907, %v981
        %v986 = vadd.f32 %v908, %v982
        %s987 = scalar_lea.vmem %s374, 112 [#allocation2]
        %v988 = vld [vmem:[%s987] sm:$0xf]
        %v989 = vld [vmem:[%s987 + $0x4] sm:$0xf]
        %v990 = vld [vmem:[%s987 + $0x8] sm:$0xf]
        %v991 = vld [vmem:[%s987 + $0xc] sm:$0xf]
        %v996 = vunpack.c.l.b16 %v988
        %v997 = vunpack.c.l.b16 %v989
        %v998 = vunpack.c.l.b16 %v990
        %v999 = vunpack.c.l.b16 %v991
        %v1000 = vpack.c.b16 %v997, %v996
        %v1001 = vpack.c.b16 %v999, %v998
        %v1003 = vsel %vm455, %v1000, 0
        %v1006 = vsel %vm455, %v1001, 0
        %1008 = vmatprep.subr.bf16.mxu0 0
        %1009 = vmatpush1.bf16.msra.mxu0 0
        %1010 = vmatprep.subr.bf16.mxu0 0
        %1011 = vmatpush1.bf16.msra.mxu0 0
        %1012 = vmatprep.subr.bf16.mxu0 0
        %1013 = vmatpush1.bf16.msra.mxu0 0
        %1014 = vmatprep.subr.bf16.mxu0 0
        %1015 = vmatpush1.bf16.msra.mxu0 0
        %1016 = vmatprep.subr.bf16.mxu0 0
        %1017 = vmatpush1.bf16.msra.mxu0 0
        %1018 = vmatprep.subr.bf16.mxu0 0
        %1019 = vmatpush1.bf16.msra.mxu0 0
        %1020 = vmatprep.subr.bf16.mxu0 0
        %1021 = vmatpush1.bf16.msra.mxu0 %v452
        %1022 = vmatprep.subr.bf16.mxu0 0
        %1023 = vmatpush1.bf16.msra.mxu0 %v451
        %1024 = vmatprep.subr.bf16.mxu0 0
        %1025 = vmatpush2.bf16.msra.mxu0 0
        %1026 = vmatprep.subr.bf16.mxu0 0
        %1027 = vmatpush2.bf16.msra.mxu0 0
        %1028 = vmatprep.subr.bf16.mxu0 0
        %1029 = vmatpush2.bf16.msra.mxu0 0
        %1030 = vmatprep.subr.bf16.mxu0 0
        %1031 = vmatpush2.bf16.msra.mxu0 0
        %1032 = vmatprep.subr.bf16.mxu0 0
        %1033 = vmatpush2.bf16.msra.mxu0 0
        %1034 = vmatprep.subr.bf16.mxu0 0
        %1035 = vmatpush2.bf16.msra.mxu0 0
        %1036 = vmatprep.subr.bf16.mxu0 0
        %1037 = vmatpush2.bf16.msra.mxu0 0
        %1038 = vmatprep.subr.bf16.mxu0 0
        %1039 = vmatpush2.bf16.msra.mxu0 0
        %1040 = vmatprep.mubr.bf16.mxu0 0
        %1041 = vmatmul.mubr.bf16.gmra.mxu0 %v1003
        %v1042 = vpop.f32.mrf.mxu0
        %v1043 = vadd.f32 %v431, %v1042
        %v1044 = vpop.f32.mrf.mxu0
        %v1045 = vpop.f32.mrf.mxu0
        %v1046 = vadd.f32 %v431, %v1045
        %v1047 = vpop.f32.mrf.mxu0
        %1048 = vmatprep.mubr.bf16.mxu0 0
        %1049 = vmatmul.mubr.bf16.gmra.mxu0 %v1006
        %v1050 = vpop.f32.mrf.mxu0
        %v1051 = vadd.f32 %v431, %v1050
        %v1052 = vpop.f32.mrf.mxu0
        %v1053 = vpop.f32.mrf.mxu0
        %v1054 = vadd.f32 %v431, %v1053
        %v1055 = vpop.f32.mrf.mxu0
        %1056 = vdwg.mxu0
        %v1057 = vmax.f32 %v1043, 0.0
        %v1058 = vmax.f32 %v1046, 0.0
        %v1059 = vmax.f32 %v1051, 0.0
        %v1060 = vmax.f32 %v1054, 0.0
        %v1061 = vadd.f32 %v983, %v1057
        %v1062 = vadd.f32 %v984, %v1058
        %v1063 = vadd.f32 %v985, %v1059
        %v1064 = vadd.f32 %v986, %v1060
        %v1065 = vld [vmem:[%s3] sm:$0x1]
        %v1066 = vlaneseq
        %v1067 = vshrl.u32 %v1066, 7
        %v1068 = vsub.s32 0, %v1067
        %v1069 = vrot.slane %v1065, %v1068
        %v1070 = vmul.f32 %v1061, %v1069
        %v1071 = vmul.f32 %v1062, %v1069
        %v1072 = vmul.f32 %v1063, %v1069
        %v1073 = vmul.f32 %v1064, %v1069
        %1074 = vadd.xlane.f32.xlu0 %v1070
        %v1075 = vpop.xlane.xlu0 %1074
        %1076 = vadd.xlane.f32.xlu0 %v1071
        %v1077 = vpop.xlane.xlu0 %1076
        %1078 = vadd.xlane.f32.xlu0 %v1072
        %v1079 = vpop.xlane.xlu0 %1078
        %1080 = vadd.xlane.f32.xlu0 %v1073
        %v1081 = vpop.xlane.xlu0 %1080
        %v1082 = vld [vmem:[%s3 + $0x1] sm:$0x1]
        %v1083 = vlaneseq
        %v1084 = vshrl.u32 %v1083, 7
        %v1085 = vsub.s32 0, %v1084
        %v1086 = vrot.slane %v1082, %v1085
        %v1087 = vmul.f32 %v1061, %v1086
        %v1088 = vmul.f32 %v1062, %v1086
        %v1089 = vmul.f32 %v1063, %v1086
        %v1090 = vmul.f32 %v1064, %v1086
        %1091 = vadd.xlane.f32.xlu0 %v1087
        %v1092 = vpop.xlane.xlu0 %1091
        %1093 = vadd.xlane.f32.xlu0 %v1088
        %v1094 = vpop.xlane.xlu0 %1093
        %1095 = vadd.xlane.f32.xlu0 %v1089
        %v1096 = vpop.xlane.xlu0 %1095
        %1097 = vadd.xlane.f32.xlu0 %v1090
        %v1098 = vpop.xlane.xlu0 %1097
        %v1099 = vld [vmem:[%s409] sm:$0xff]
        %v1100 = vld [vmem:[%s409 + $0x8] sm:$0xff]
        %v1101 = vld [vmem:[%s409 + $0x10] sm:$0xff]
        %v1102 = vld [vmem:[%s409 + $0x18] sm:$0xff]
        %v1103 = vmul.f32 %v1075, %v1099
        %v1104 = vmul.f32 %v1077, %v1100
        %v1105 = vmul.f32 %v1079, %v1101
        %v1106 = vmul.f32 %v1081, %v1102
        %v1107 = vadd.f32 %v1103, %v1092
        %v1108 = vadd.f32 %v1104, %v1094
        %v1109 = vadd.f32 %v1105, %v1096
        %v1110 = vadd.f32 %v1106, %v1098
        %vm1111 = vcmask 7168
        %1112 = vst.msk [vmem:[%s415] sm:$0xff] %vm1111, %v1107
        %1113 = vst.msk [vmem:[%s415 + $0x8] sm:$0xff] %vm1111, %v1108
        %1114 = vst.msk [vmem:[%s415 + $0x10] sm:$0xff] %vm1111, %v1109
        %1115 = vst.msk [vmem:[%s415 + $0x18] sm:$0xff] %vm1111, %v1110
        %s1116 = smul.u32 4, %s16
        %p1117 = scmp.lt.s32.totalorder %s1116, 7
        %s1118 = scalar_select %p1117, %s1116, 7
        %s1119 = smul.addr %s1118, 8
        %s1120 = scalar_lea.vmem %s5, %s1119
        // Predicated region
        $region82: #{vector_simulator_forward.1} parent=76 // pred_check
          %p1121 = pneg %p149
        $region83: #{vector_simulator_forward.1} parent=76 // pred_check_branch
          %1123 = sbr.rel (%p1121) target = $region85
        $region84: #{vector_simulator_forward.1} parent=76 // pred_region
          %s1124 = smul.u32 4, %s16
        $region85: #{vector_simulator_forward.1} parent=76 // pred_fallthru
          _
      $region77: #{vector_simulator_forward.1} parent=5 // pred_fallthru
        _
      %p1125 = scmp.le.s32.totalorder 2, %s11
      // Predicated region
      $region86: #{vector_simulator_forward.1} parent=5 // pred_check
        %p1126 = pneg %p1125
      $region87: #{vector_simulator_forward.1} parent=5 // pred_check_branch
        %1128 = sbr.rel (%p1126) target = $region89
      $region88: #{vector_simulator_forward.1} parent=5 // pred_region
        %s1129 = ssub.s32 %s11, 2
        // Predicated region
        $region90: #{vector_simulator_forward.1} parent=88 // pred_check
          %p1130 = pneg %p155
        $region91: #{vector_simulator_forward.1} parent=88 // pred_check_branch
          %1132 = sbr.rel (%p1130) target = $region93
        $region92: #{vector_simulator_forward.1} parent=88 // pred_region
          %s1133 = smul.u32 4, %s17
          %p1134 = scmp.lt.s32.totalorder %s1133, 7
          %s1135 = scalar_select %p1134, %s1133, 7
          %s1136 = smul.addr %s1135, 8
          %s1137 = scalar_lea.vmem %s5, %s1136
        $region93: #{vector_simulator_forward.1} parent=88 // pred_fallthru
          _
      $region89: #{vector_simulator_forward.1} parent=5 // pred_fallthru
        _
    $region6: #{vector_simulator_forward.1} parent=1 // loop_footer
      %s15 = sadd.s32 1, %s11
    $region7: #{vector_simulator_forward.1} parent=1 // loop_footer_branch
      %10 = sbr.rel target = $region3
    $region8: #{vector_simulator_forward.1} parent=1 // loop_exit
      _

</llo_original>
